<compile_context>
chip_gen: v7x
topology: tpu7x:2x2x1
jax: 0.10.0
libtpu: 0.0.40
codegen_flags: <defaults>
</compile_context>

<pallas_src>
import functools
import math

import jax
import jax.numpy as jnp
from jax.experimental import pallas as pl
from jax.experimental.pallas import tpu as pltpu

_VMEM_BUDGET = 20 * 2**20          # per-step working-set budget (v7x-safe)
_VMEM_LIMIT_CAP = 48 * 2**20       # leave compiler scratch headroom on v7x


def _prob_embed_kernel(x_ref, w1_ref, b1_ref, w2_ref, b2_ref, o_ref):
    # x_ref:  (tr, K)   folded input rows (g tokens per row, zero-padded to K)
    # w1_ref: (K, D)    block-diag first-layer weight (kron(eye(g), w1^T))
    # b1_ref: (1, D)    tiled first-layer bias
    # w2_ref: (D, D)    block-diag second-layer weight (kron(eye(g), w2^T)),
    #                   f32 by default, bf16 when mxu_bf16=True
    # b2_ref: (1, D)    tiled second-layer bias
    # o_ref:  (tr, D)   lane-dense output tile (D is a multiple of 128)
    h = jnp.dot(x_ref[...], w1_ref[...], preferred_element_type=jnp.float32)
    h = jnp.maximum(h + b1_ref[...], 0.0)                       # ReLU (VPU)
    w2 = w2_ref[...]
    z = jnp.dot(h.astype(w2.dtype), w2, preferred_element_type=jnp.float32)
    z = z + b2_ref[...]
    o_ref[...] = jnp.tanh(z).astype(o_ref.dtype)                # Tanh (EUP)


def _round_up(a, b):
    return ((a + b - 1) // b) * b


@functools.lru_cache(maxsize=None)
def _build_prob_embed_call(grid, tr, K, D, R_pad, out_dtype_name,
                           w2_itemsize, vmem_limit):
    out_dtype = jnp.dtype(out_dtype_name)
    cost = pl.CostEstimate(
        flops=int(2 * R_pad * D * (K + D)),
        transcendentals=int(R_pad * D),
        bytes_accessed=int(4 * (R_pad * K + K * D + 2 * D)
                           + w2_itemsize * D * D
                           + out_dtype.itemsize * R_pad * D),
    )
    return pl.pallas_call(
        _prob_embed_kernel,
        out_shape=jax.ShapeDtypeStruct((R_pad, D), out_dtype),
        grid_spec=pltpu.PrefetchScalarGridSpec(
            num_scalar_prefetch=0,
            grid=(grid,),
            in_specs=[
                pl.BlockSpec((tr, K), lambda i: (i, 0)),
                pl.BlockSpec((K, D), lambda i: (0, 0)),
                pl.BlockSpec((1, D), lambda i: (0, 0)),
                pl.BlockSpec((D, D), lambda i: (0, 0)),
                pl.BlockSpec((1, D), lambda i: (0, 0)),
            ],
            out_specs=pl.BlockSpec((tr, D), lambda i: (i, 0)),
        ),
        compiler_params=pltpu.CompilerParams(
            dimension_semantics=("parallel",),
            vmem_limit_bytes=vmem_limit,
        ),
        cost_estimate=cost,
    )


def probability_embedding(x, w1, b1, w2, b2, *, tm=None,
                          out_dtype=jnp.float32, mxu_bf16=False):
    """
    x:  (B, S, 1) float32
    w1: (d_model, 1)        -- nn.Linear(1, d_model).weight
    b1: (d_model,)          -- nn.Linear(1, d_model).bias
    w2: (d_model, d_model)  -- nn.Linear(d_model, d_model).weight
    b2: (d_model,)          -- nn.Linear(d_model, d_model).bias
    returns: (B, S, d_model) in `out_dtype` (float32 matches PyTorch exactly;
    bfloat16 roughly halves the dominant HBM store traffic, opt-in).
    `mxu_bf16=True` runs the second matmul with bf16 operands (f32 accumulate);
    recommended on v7x, a deliberate precision tradeoff elsewhere.
    """
    B, S, one = x.shape
    assert one == 1
    d_model = w1.shape[0]
    M = B * S
    f32 = jnp.float32
    out_itemsize = jnp.dtype(out_dtype).itemsize

    # ---- lane folding / feature padding: make the kernel lane width D a
    # multiple of 128 so every store is an unmasked full-lane vst.
    if d_model % 128 == 0:
        g, d_pad = 1, d_model                          # already lane-dense
    else:
        lcm = d_model * 128 // math.gcd(d_model, 128)
        if lcm <= 512:
            g, d_pad = lcm // d_model, d_model         # exact fold, no padding
        else:
            g, d_pad = 1, _round_up(d_model, 128)      # zero-pad feature axis
    D = g * d_pad                                      # in-kernel lane width
    K = max(8, g)                                      # padded contraction dim (layer 1)

    # ---- VMEM working-set estimate per grid step (corrected: lane-padded
    # input, f32 h/z intermediates, actual output byte width, 2x buffering).
    lane_K = _round_up(K, 128)

    def vmem_est(tm_tok):
        tr_ = max(8, tm_tok // g)
        in_b = 2 * tr_ * lane_K * 4                       # double-buffered x tile
        out_b = 2 * tr_ * D * out_itemsize                # double-buffered output tile
        inter_b = 2 * tr_ * D * 4                         # h / z f32 intermediates
        w_b = 2 * (K * D + D * D + 2 * 8 * D) * 4         # resident weights (2x, f32)
        return in_b + out_b + inter_b + w_b

    # ---- row-tile selection (in tokens): start big so the budget binds.
    if tm is None:
        tm = 32768
        while tm > 256 and vmem_est(tm) > _VMEM_BUDGET:
            tm //= 2
        if M > 8 * g:
            # Keep >= 2 grid steps so both v7x TensorCores get work.
            tm = min(tm, _round_up(pl.cdiv(M, 2), 8 * g))
        else:
            tm = min(tm, _round_up(M, 8 * g))
    tm = max(8 * g, _round_up(tm, 8 * g))                 # folded rows multiple of 8
    tr = tm // g                                          # folded rows per grid step

    R = pl.cdiv(M, g)                                     # folded rows needed
    grid = pl.cdiv(R, tr)
    R_pad = grid * tr
    M_pad = R_pad * g

    # ---- wrapper-side prep: pad tokens, fold into lanes, build kron'd weights.
    # (Padding is appended at the end only, so only the final tile carries it.)
    x_flat = x.reshape(M).astype(f32)
    if M_pad != M:
        x_flat = jnp.pad(x_flat, (0, M_pad - M))
    x_folded = x_flat.reshape(R_pad, g)
    if K != g:
        x_folded = jnp.pad(x_folded, ((0, 0), (0, K - g)))              # (R_pad, K)

    w1_tok = w1.reshape(1, d_model).astype(f32)
    b1_tok = b1.astype(f32)
    w2_tok = w2.T.astype(f32)
    b2_tok = b2.astype(f32)
    if d_pad != d_model:
        w1_tok = jnp.pad(w1_tok, ((0, 0), (0, d_pad - d_model)))
        b1_tok = jnp.pad(b1_tok, (0, d_pad - d_model))
        w2_tok = jnp.pad(w2_tok, ((0, d_pad - d_model), (0, d_pad - d_model)))
        b2_tok = jnp.pad(b2_tok, (0, d_pad - d_model))

    eye_g = jnp.eye(g, dtype=f32)
    w1_blk = jnp.kron(eye_g, w1_tok)                                     # (g, D)
    if K != g:
        w1_blk = jnp.pad(w1_blk, ((0, K - g), (0, 0)))                   # (K, D)
    b1_t = jnp.tile(b1_tok, g).reshape(1, D)
    w2_blk = jnp.kron(eye_g, w2_tok)                                     # (D, D)
    b2_t = jnp.tile(b2_tok, g).reshape(1, D)
    if mxu_bf16:
        w2_blk = w2_blk.astype(jnp.bfloat16)   # bf16 MXU operands, f32 accumulate

    vmem_limit = int(min(_VMEM_LIMIT_CAP,
                         max(24 * 2**20, int(1.5 * vmem_est(tm)))))

    call = _build_prob_embed_call(
        grid, tr, K, D, R_pad, jnp.dtype(out_dtype).name,
        int(w2_blk.dtype.itemsize), vmem_limit)
    out = call(x_folded, w1_blk, b1_t, w2_blk, b2_t)

    # Unfold lanes back to tokens, drop padding (only the trailing tile /
    # trailing zero feature columns are padded; when shapes already match
    # this is a pure reshape with no extra HBM pass).
    out = out.reshape(R_pad * g, d_pad)
    if M_pad != M:
        out = out[:M]
    if d_pad != d_model:
        out = out[:, :d_model]
    return out.reshape(B, S, d_model)


def _reference(x, w1, b1, w2, b2):
    h = jnp.maximum(x @ w1.T + b1, 0.0)
    z = jnp.dot(h, w2.T, precision=jax.lax.Precision.HIGHEST) + b2
    return jnp.tanh(z)


if __name__ == "__main__":
    B, S, d_model = 2, 8, 32
    key = jax.random.PRNGKey(0)
    kx, k1, k2, k3, k4 = jax.random.split(key, 5)

    x = jax.random.uniform(kx, (B, S, 1), dtype=jnp.float32)
    w1 = jax.random.normal(k1, (d_model, 1), dtype=jnp.float32) * 0.5
    b1 = jax.random.normal(k2, (d_model,), dtype=jnp.float32) * 0.1
    w2 = jax.random.normal(k3, (d_model, d_model), dtype=jnp.float32) / jnp.sqrt(d_model)
    b2 = jax.random.normal(k4, (d_model,), dtype=jnp.float32) * 0.1

    out = probability_embedding(x, w1, b1, w2, b2)
    out = jax.block_until_ready(out)

    ref = _reference(x, w1, b1, w2, b2)
    assert out.shape == (B, S, d_model)
    assert jnp.allclose(out, ref, atol=1e-4, rtol=1e-4), "mismatch vs reference"

    print("KERNEL_OK")
</pallas_src>

<mosaic_0001>
module attributes {stable_mosaic.version = 11 : i64} {
  func.func @_prob_embed_kernel(%arg0: i32, %arg1: memref<8x8xf32, #tpu.memory_space<vmem>>, %arg2: memref<8x128xf32, #tpu.memory_space<vmem>>, %arg3: memref<1x128xf32, #tpu.memory_space<vmem>>, %arg4: memref<128x128xf32, #tpu.memory_space<vmem>>, %arg5: memref<1x128xf32, #tpu.memory_space<vmem>>, %arg6: memref<8x128xf32, #tpu.memory_space<vmem>>) attributes {dimension_semantics = [#tpu.dimension_semantics<parallel>], iteration_bounds = array<i64: 1>, scalar_prefetch = 0 : i64, scratch_operands = 0 : i64, tpu.core_type = #tpu.core_type<tc>, window_params = [{transform_indices = @transform_0, window_bounds = array<i64: 8, 8>}, {pipeline_mode = #tpu.pipeline_mode<synchronous>, transform_indices = @transform_1, window_bounds = array<i64: 8, 128>}, {pipeline_mode = #tpu.pipeline_mode<synchronous>, transform_indices = @transform_2, window_bounds = array<i64: 1, 128>}, {pipeline_mode = #tpu.pipeline_mode<synchronous>, transform_indices = @transform_3, window_bounds = array<i64: 128, 128>}, {pipeline_mode = #tpu.pipeline_mode<synchronous>, transform_indices = @transform_4, window_bounds = array<i64: 1, 128>}, {transform_indices = @transform_5, window_bounds = array<i64: 8, 128>}]} {
    %c0 = arith.constant 0 : index
    %c0_0 = arith.constant 0 : index
    %0 = vector.load %arg1[%c0, %c0_0] : memref<8x8xf32, #tpu.memory_space<vmem>>, vector<8x8xf32>
    %c0_1 = arith.constant 0 : index
    %c0_2 = arith.constant 0 : index
    %1 = vector.load %arg2[%c0_1, %c0_2] : memref<8x128xf32, #tpu.memory_space<vmem>>, vector<8x128xf32>
    %cst = arith.constant dense<0.000000e+00> : vector<8x128xf32>
    %2 = tpu.matmul %0, %1, %cst {dimension_numbers = #tpu.dot_dimension_numbers<[1], [0], [0], [1], [0, 0, 1, 1], [], []>} : vector<8x8xf32>, vector<8x128xf32>, vector<8x128xf32> -> vector<8x128xf32>
    %c0_3 = arith.constant 0 : index
    %c0_4 = arith.constant 0 : index
    %3 = vector.load %arg3[%c0_3, %c0_4] : memref<1x128xf32, #tpu.memory_space<vmem>>, vector<1x128xf32>
    %4 = vector.broadcast %3 : vector<1x128xf32> to vector<8x128xf32>
    %5 = arith.addf %2, %4 : vector<8x128xf32>
    %cst_5 = arith.constant 0.000000e+00 : f32
    %6 = vector.broadcast %cst_5 : f32 to vector<8x128xf32>
    %7 = arith.maximumf %5, %6 : vector<8x128xf32>
    %c0_6 = arith.constant 0 : index
    %c0_7 = arith.constant 0 : index
    %8 = vector.load %arg4[%c0_6, %c0_7] : memref<128x128xf32, #tpu.memory_space<vmem>>, vector<128x128xf32>
    %cst_8 = arith.constant dense<0.000000e+00> : vector<8x128xf32>
    %9 = tpu.matmul %7, %8, %cst_8 {dimension_numbers = #tpu.dot_dimension_numbers<[1], [0], [0], [1], [0, 0, 1, 1], [], []>} : vector<8x128xf32>, vector<128x128xf32>, vector<8x128xf32> -> vector<8x128xf32>
    %c0_9 = arith.constant 0 : index
    %c0_10 = arith.constant 0 : index
    %10 = vector.load %arg5[%c0_9, %c0_10] : memref<1x128xf32, #tpu.memory_space<vmem>>, vector<1x128xf32>
    %11 = vector.broadcast %10 : vector<1x128xf32> to vector<8x128xf32>
    %12 = arith.addf %9, %11 : vector<8x128xf32>
    %13 = math.tanh %12 : vector<8x128xf32>
    %c0_11 = arith.constant 0 : index
    %c0_12 = arith.constant 0 : index
    %14 = vector.load %arg6[%c0_11, %c0_12] : memref<8x128xf32, #tpu.memory_space<vmem>>, vector<8x128xf32>
    tpu.vector_store %arg6[%c0_11, %c0_12], %13 {strides = array<i32>} : memref<8x128xf32, #tpu.memory_space<vmem>>, vector<8x128xf32>,
    return
  }
  func.func @transform_0(%arg0: i32) -> (i32, i32) {
    %c0_i32 = arith.constant 0 : i32
    %c0_i32_0 = arith.constant 0 : i32
    return %arg0, %c0_i32 : i32, i32
  }
  func.func @transform_1(%arg0: i32) -> (i32, i32) {
    %c0_i32 = arith.constant 0 : i32
    %c0_i32_0 = arith.constant 0 : i32
    %c0_i32_1 = arith.constant 0 : i32
    return %c0_i32, %c0_i32_0 : i32, i32
  }
  func.func @transform_2(%arg0: i32) -> (i32, i32) {
    %c0_i32 = arith.constant 0 : i32
    %c0_i32_0 = arith.constant 0 : i32
    %c0_i32_1 = arith.constant 0 : i32
    return %c0_i32, %c0_i32_0 : i32, i32
  }
  func.func @transform_3(%arg0: i32) -> (i32, i32) {
    %c0_i32 = arith.constant 0 : i32
    %c0_i32_0 = arith.constant 0 : i32
    %c0_i32_1 = arith.constant 0 : i32
    return %c0_i32, %c0_i32_0 : i32, i32
  }
  func.func @transform_4(%arg0: i32) -> (i32, i32) {
    %c0_i32 = arith.constant 0 : i32
    %c0_i32_0 = arith.constant 0 : i32
    %c0_i32_1 = arith.constant 0 : i32
    return %c0_i32, %c0_i32_0 : i32, i32
  }
  func.func @transform_5(%arg0: i32) -> (i32, i32) {
    %c0_i32 = arith.constant 0 : i32
    %c0_i32_0 = arith.constant 0 : i32
    return %arg0, %c0_i32 : i32, i32
  }
}

</mosaic_0001>

<llo_original>
// kernel: tpu_custom_call.1
$region0: #{tpu_custom_call.1}
  #allocation0 [shape = 'u32[]', space=smem, size = 0x4, offset = 0x4, fixed_abs, tag = 'smem constant byte address 0x4 - core index']
  #allocation1 [shape = 'u32[144,128]{1,0:T(1,128)}', space=vmem, size = 0x12000, scoped, tag = 'internal scratch']
  %s0 = inlined_call_operand.hbm [shape: f32[8,8], index: 0, kind: input, shape index: {}]
  %s1 = inlined_call_operand.hbm [shape: f32[8,128], index: 1, kind: input, shape index: {}]
  %s2 = inlined_call_operand.vmem [shape: f32[1,128], index: 2, kind: input, shape index: {}]
  %s3 = inlined_call_operand.hbm [shape: f32[128,128], index: 3, kind: input, shape index: {}]
  %s4 = inlined_call_operand.vmem [shape: f32[1,128], index: 4, kind: input, shape index: {}]
  %s5 = inlined_call_operand.hbm [shape: f32[8,128], index: 5, kind: output, shape index: {}]
  %s6 = sld [smem:[#allocation0]]
  $region42: #{tpu_custom_call.1} parent=0
    _
  %s8 = ssub.s32 1, %s6
  %s9 = scalar_select 0, %s8, %s6
  $region1: #{tpu_custom_call.1} parent=0
    #allocation2 [shape = 'u8[4096]{0}', space=vmem, size = 0x1000, scoped, tag = 'input window, operand 0, single buffered']
    #allocation3 [shape = 's32[1]{0}', space=sflag, size = 0x4, scoped, tag = 'scoped memory for tpu_custom_call.1']
    #allocation4 [shape = 's32[1]{0}', space=sflag, size = 0x4, scoped, tag = 'scoped memory for tpu_custom_call.1']
    #allocation5 [shape = 'u8[4096]{0}', space=vmem, size = 0x1000, scoped, tag = 'input window, operand 1, single buffered']
    #allocation6 [shape = 's32[1]{0}', space=sflag, size = 0x4, scoped, tag = 'scoped memory for tpu_custom_call.1']
    #allocation7 [shape = 'u8[65536]{0}', space=vmem, size = 0x10000, scoped, tag = 'input window, operand 3, single buffered']
    #allocation8 [shape = 'u8[4096]{0}', space=vmem, size = 0x1000, scoped, tag = 'output window, operand 0, single buffered']
    %10 = vsyncpa [#allocation3], 0
    %11 = vsyncpa [#allocation6], 0
    %12 = vsyncpa [#allocation4], 0
    // Predicated region
    $region2: #{tpu_custom_call.1} parent=1 // pred_check
      _
    $region3: #{tpu_custom_call.1} parent=1 // pred_check_branch
      %14 = sbr.rel (0) target = $region5
    $region4: #{tpu_custom_call.1} parent=1 // pred_region
      %s16 = ssub.s32 128, 128
      %17 = vsyncadd [#allocation3], %s16
      %s19 = sshll.u32 [#allocation2], 4
      %s20 = int_to_ptr.vmem [resolvable:$true] %s19
      %22 = dma.hbm_to_vmem [thread:$0]  %s0, 128, %s20, [#allocation3]
    $region5: #{tpu_custom_call.1} parent=1 // pred_fallthru
      _
    // Predicated region
    $region6: #{tpu_custom_call.1} parent=1 // pred_check
      _
    $region7: #{tpu_custom_call.1} parent=1 // pred_check_branch
      %24 = sbr.rel (0) target = $region9
    $region8: #{tpu_custom_call.1} parent=1 // pred_region
      %s26 = ssub.s32 128, 128
      %27 = vsyncadd [#allocation6], %s26
      %s29 = sshll.u32 [#allocation5], 4
      %s30 = int_to_ptr.vmem [resolvable:$true] %s29
      %32 = dma.hbm_to_vmem [thread:$0]  %s1, 128, %s30, [#allocation6]
    $region9: #{tpu_custom_call.1} parent=1 // pred_fallthru
      _
    // Predicated region
    $region10: #{tpu_custom_call.1} parent=1 // pred_check
      _
    $region11: #{tpu_custom_call.1} parent=1 // pred_check_branch
      %34 = sbr.rel (0) target = $region13
    $region12: #{tpu_custom_call.1} parent=1 // pred_region
      _
    $region13: #{tpu_custom_call.1} parent=1 // pred_fallthru
      _
    // Predicated region
    $region14: #{tpu_custom_call.1} parent=1 // pred_check
      _
    $region15: #{tpu_custom_call.1} parent=1 // pred_check_branch
      %36 = sbr.rel (0) target = $region17
    $region16: #{tpu_custom_call.1} parent=1 // pred_region
      %s38 = ssub.s32 2048, 2048
      %39 = vsyncadd [#allocation6], %s38
      %s40 = sshll.u32 [#allocation7], 4
      %s41 = int_to_ptr.vmem [resolvable:$true] %s40
      %46 = dma.hbm_to_vmem [thread:$0]  %s3, 2048, %s41, [#allocation6], 128, 128, 8
    $region17: #{tpu_custom_call.1} parent=1 // pred_fallthru
      _
    // Predicated region
    $region18: #{tpu_custom_call.1} parent=1 // pred_check
      _
    $region19: #{tpu_custom_call.1} parent=1 // pred_check_branch
      %48 = sbr.rel (0) target = $region21
    $region20: #{tpu_custom_call.1} parent=1 // pred_region
      _
    $region21: #{tpu_custom_call.1} parent=1 // pred_fallthru
      _
    // Predicated region
    $region22: #{tpu_custom_call.1} parent=1 // pred_check
      _
    $region23: #{tpu_custom_call.1} parent=1 // pred_check_branch
      %50 = sbr.rel (0) target = $region25
    $region24: #{tpu_custom_call.1} parent=1 // pred_region
      %51 = dma.done [#allocation3], 128
    $region25: #{tpu_custom_call.1} parent=1 // pred_fallthru
      _
    // Predicated region
    $region26: #{tpu_custom_call.1} parent=1 // pred_check
      _
    $region27: #{tpu_custom_call.1} parent=1 // pred_check_branch
      %53 = sbr.rel (0) target = $region29
    $region28: #{tpu_custom_call.1} parent=1 // pred_region
      %54 = dma.done [#allocation6], 128
    $region29: #{tpu_custom_call.1} parent=1 // pred_fallthru
      _
    // Predicated region
    $region30: #{tpu_custom_call.1} parent=1 // pred_check
      _
    $region31: #{tpu_custom_call.1} parent=1 // pred_check_branch
      %56 = sbr.rel (0) target = $region33
    $region32: #{tpu_custom_call.1} parent=1 // pred_region
      %57 = dma.done [#allocation6], 2048
    $region33: #{tpu_custom_call.1} parent=1 // pred_fallthru
      _
    %v58 = vld [vmem:[#allocation2] sm:$0xff]
    %v59 = vld [vmem:[#allocation5] sm:$0xff]
    %v60 = vld [vmem:[%s2] sm:$0x1]
    %v62 = vlaneseq
    %v63 = vshrl.u32 %v62, 7
    %v64 = vsub.s32 0, %v63
    %v65 = vrot.slane %v60, %v64
    %vm67 = vcmask 64512
    %v69 = vsel %vm67, %v58, 0
    %71 = vmatprep.subr.mxu0 0.0
    %72 = vmatpush1.msra.mxu0 %v59
    %73 = vmatprep.subr.mxu0 0.0
    %74 = vmatpush1.msra.mxu0 0.0
    %75 = vmatprep.subr.mxu0 0.0
    %76 = vmatpush1.msra.mxu0 0.0
    %77 = vmatprep.subr.mxu0 0.0
    %78 = vmatpush1.msra.mxu0 0.0
    %79 = vmatprep.subr.mxu0 0.0
    %80 = vmatpush1.msra.mxu0 0.0
    %81 = vmatprep.subr.mxu0 0.0
    %82 = vmatpush1.msra.mxu0 0.0
    %83 = vmatprep.subr.mxu0 0.0
    %84 = vmatpush1.msra.mxu0 0.0
    %85 = vmatprep.subr.mxu0 0.0
    %86 = vmatpush1.msra.mxu0 0.0
    %87 = vmatprep.subr.mxu0 0.0
    %88 = vmatpush1.msra.mxu0 0.0
    %89 = vmatprep.subr.mxu0 0.0
    %90 = vmatpush1.msra.mxu0 0.0
    %91 = vmatprep.subr.mxu0 0.0
    %92 = vmatpush1.msra.mxu0 0.0
    %93 = vmatprep.subr.mxu0 0.0
    %94 = vmatpush1.msra.mxu0 0.0
    %95 = vmatprep.subr.mxu0 0.0
    %96 = vmatpush1.msra.mxu0 0.0
    %97 = vmatprep.subr.mxu0 0.0
    %98 = vmatpush1.msra.mxu0 0.0
    %99 = vmatprep.subr.mxu0 0.0
    %100 = vmatpush1.msra.mxu0 0.0
    %101 = vmatprep.subr.mxu0 0.0
    %102 = vmatpush1.msra.mxu0 0.0
    %103 = vmatprep.subr.mxu0 0.0
    %104 = vmatpush1.msra.mxu0 0.0
    %105 = vmatprep.subr.mxu0 0.0
    %106 = vmatpush1.msra.mxu0 0.0
    %107 = vmatprep.subr.mxu0 0.0
    %108 = vmatpush1.msra.mxu0 0.0
    %109 = vmatprep.subr.mxu0 0.0
    %110 = vmatpush1.msra.mxu0 0.0
    %111 = vmatprep.subr.mxu0 0.0
    %112 = vmatpush1.msra.mxu0 0.0
    %113 = vmatprep.subr.mxu0 0.0
    %114 = vmatpush1.msra.mxu0 0.0
    %115 = vmatprep.subr.mxu0 0.0
    %116 = vmatpush1.msra.mxu0 0.0
    %117 = vmatprep.subr.mxu0 0.0
    %118 = vmatpush1.msra.mxu0 0.0
    %119 = vmatprep.subr.mxu0 0.0
    %120 = vmatpush1.msra.mxu0 0.0
    %121 = vmatprep.subr.mxu0 0.0
    %122 = vmatpush1.msra.mxu0 0.0
    %123 = vmatprep.subr.mxu0 0.0
    %124 = vmatpush1.msra.mxu0 0.0
    %125 = vmatprep.subr.mxu0 0.0
    %126 = vmatpush1.msra.mxu0 0.0
    %127 = vmatprep.subr.mxu0 0.0
    %128 = vmatpush1.msra.mxu0 0.0
    %129 = vmatprep.subr.mxu0 0.0
    %130 = vmatpush1.msra.mxu0 0.0
    %131 = vmatprep.subr.mxu0 0.0
    %132 = vmatpush1.msra.mxu0 0.0
    %133 = vmatprep.subr.mxu0 0.0
    %134 = vmatpush1.msra.mxu0 0.0
    %135 = vmatprep.mubr.f32.mxu0 0.0
    %136 = vmatmul.mubr.f32.gmra.mrb[0].mxu0 %v69
    %v137 = vpop.f32.mrb[0].mxu0
    %v138 = vadd.f32 %v65, %v137
    %v139 = vpop.f32.mrb[0].mxu0
    %140 = vdwg.mxu0
    %v141 = vmax.f32 %v138, 0.0
    %v142 = vld [vmem:[#allocation7] sm:$0xff]
    %v143 = vld [vmem:[#allocation7 + $0x8] sm:$0xff]
    %v144 = vld [vmem:[#allocation7 + $0x10] sm:$0xff]
    %v145 = vld [vmem:[#allocation7 + $0x18] sm:$0xff]
    %v146 = vld [vmem:[#allocation7 + $0x20] sm:$0xff]
    %v147 = vld [vmem:[#allocation7 + $0x28] sm:$0xff]
    %v148 = vld [vmem:[#allocation7 + $0x30] sm:$0xff]
    %v149 = vld [vmem:[#allocation7 + $0x38] sm:$0xff]
    %v150 = vld [vmem:[#allocation7 + $0x40] sm:$0xff]
    %v151 = vld [vmem:[#allocation7 + $0x48] sm:$0xff]
    %v152 = vld [vmem:[#allocation7 + $0x50] sm:$0xff]
    %v153 = vld [vmem:[#allocation7 + $0x58] sm:$0xff]
    %v154 = vld [vmem:[#allocation7 + $0x60] sm:$0xff]
    %v155 = vld [vmem:[#allocation7 + $0x68] sm:$0xff]
    %v156 = vld [vmem:[#allocation7 + $0x70] sm:$0xff]
    %v157 = vld [vmem:[#allocation7 + $0x78] sm:$0xff]
    %v158 = vld [vmem:[%s4] sm:$0x1]
    %v160 = vlaneseq
    %v161 = vshrl.u32 %v160, 7
    %v162 = vsub.s32 0, %v161
    %v163 = vrot.slane %v158, %v162
    %165 = vmatprep.subr.mxu0 0.0
    %166 = vmatpush1.msra.mxu0 %v142
    %167 = vmatprep.subr.mxu0 0.0
    %168 = vmatpush1.msra.mxu0 %v143
    %169 = vmatprep.subr.mxu0 0.0
    %170 = vmatpush1.msra.mxu0 %v144
    %171 = vmatprep.subr.mxu0 0.0
    %172 = vmatpush1.msra.mxu0 %v145
    %173 = vmatprep.subr.mxu0 0.0
    %174 = vmatpush1.msra.mxu0 %v146
    %175 = vmatprep.subr.mxu0 0.0
    %176 = vmatpush1.msra.mxu0 %v147
    %177 = vmatprep.subr.mxu0 0.0
    %178 = vmatpush1.msra.mxu0 %v148
    %179 = vmatprep.subr.mxu0 0.0
    %180 = vmatpush1.msra.mxu0 %v149
    %181 = vmatprep.subr.mxu0 0.0
    %182 = vmatpush1.msra.mxu0 %v150
    %183 = vmatprep.subr.mxu0 0.0
    %184 = vmatpush1.msra.mxu0 %v151
    %185 = vmatprep.subr.mxu0 0.0
    %186 = vmatpush1.msra.mxu0 %v152
    %187 = vmatprep.subr.mxu0 0.0
    %188 = vmatpush1.msra.mxu0 %v153
    %189 = vmatprep.subr.mxu0 0.0
    %190 = vmatpush1.msra.mxu0 %v154
    %191 = vmatprep.subr.mxu0 0.0
    %192 = vmatpush1.msra.mxu0 %v155
    %193 = vmatprep.subr.mxu0 0.0
    %194 = vmatpush1.msra.mxu0 %v156
    %195 = vmatprep.subr.mxu0 0.0
    %196 = vmatpush1.msra.mxu0 %v157
    %197 = vmatprep.subr.mxu0 0.0
    %198 = vmatpush1.msra.mxu0 0.0
    %199 = vmatprep.subr.mxu0 0.0
    %200 = vmatpush1.msra.mxu0 0.0
    %201 = vmatprep.subr.mxu0 0.0
    %202 = vmatpush1.msra.mxu0 0.0
    %203 = vmatprep.subr.mxu0 0.0
    %204 = vmatpush1.msra.mxu0 0.0
    %205 = vmatprep.subr.mxu0 0.0
    %206 = vmatpush1.msra.mxu0 0.0
    %207 = vmatprep.subr.mxu0 0.0
    %208 = vmatpush1.msra.mxu0 0.0
    %209 = vmatprep.subr.mxu0 0.0
    %210 = vmatpush1.msra.mxu0 0.0
    %211 = vmatprep.subr.mxu0 0.0
    %212 = vmatpush1.msra.mxu0 0.0
    %213 = vmatprep.subr.mxu0 0.0
    %214 = vmatpush1.msra.mxu0 0.0
    %215 = vmatprep.subr.mxu0 0.0
    %216 = vmatpush1.msra.mxu0 0.0
    %217 = vmatprep.subr.mxu0 0.0
    %218 = vmatpush1.msra.mxu0 0.0
    %219 = vmatprep.subr.mxu0 0.0
    %220 = vmatpush1.msra.mxu0 0.0
    %221 = vmatprep.subr.mxu0 0.0
    %222 = vmatpush1.msra.mxu0 0.0
    %223 = vmatprep.subr.mxu0 0.0
    %224 = vmatpush1.msra.mxu0 0.0
    %225 = vmatprep.subr.mxu0 0.0
    %226 = vmatpush1.msra.mxu0 0.0
    %227 = vmatprep.subr.mxu0 0.0
    %228 = vmatpush1.msra.mxu0 0.0
    %229 = vmatprep.mubr.f32.mxu0 0.0
    %230 = vmatmul.mubr.f32.gmra.mrb[0].mxu0 %v141
    %v231 = vpop.f32.mrb[0].mxu0
    %v232 = vadd.f32 %v163, %v231
    %v233 = vpop.f32.mrb[0].mxu0
    %234 = vdwg.mxu0
    %v235 = vtanh.pop %v232
    %236 = vst [vmem:[#allocation8] sm:$0xff] %v235
    // Predicated region
    $region34: #{tpu_custom_call.1} parent=1 // pred_check
      _
    $region35: #{tpu_custom_call.1} parent=1 // pred_check_branch
      %238 = sbr.rel (0) target = $region37
    $region36: #{tpu_custom_call.1} parent=1 // pred_region
      %s240 = ssub.s32 128, 128
      %241 = vsyncadd [#allocation4], %s240
      %s243 = sshll.u32 [#allocation8], 4
      %s244 = int_to_ptr.vmem [resolvable:$true] %s243
      %246 = dma.vmem_to_hbm [thread:$0]  %s244, 128, %s5, [#allocation4]
    $region37: #{tpu_custom_call.1} parent=1 // pred_fallthru
      _
    // Predicated region
    $region38: #{tpu_custom_call.1} parent=1 // pred_check
      _
    $region39: #{tpu_custom_call.1} parent=1 // pred_check_branch
      %248 = sbr.rel (0) target = $region41
    $region40: #{tpu_custom_call.1} parent=1 // pred_region
      %249 = dma.done [#allocation4], 128
    $region41: #{tpu_custom_call.1} parent=1 // pred_fallthru
      _
    %250 = vsyncpa [#allocation3], 1
    %251 = vsyncpa [#allocation6], 1
    %252 = vsyncpa [#allocation4], 1

</llo_original>
